<compile_context>
chip_gen: v7x
topology: tpu7x:2x2x1
jax: 0.10.0
libtpu: 0.0.40
codegen_flags: <defaults>
</compile_context>

<pallas_src>
import jax
import jax.numpy as jnp
from jax import lax
from jax.experimental import pallas as pl
from jax.experimental.pallas import tpu as pltpu


def _round_up(x, m):
    return (x + m - 1) // m * m


def _invariant_spec(shape, index_map, single_buffer):
    """BlockSpec for a grid-invariant operand (same block every grid step).

    With single_buffer=True the block lives in a single VMEM buffer instead of
    the default double buffer (it is only DMA'd once), halving its footprint.
    """
    if single_buffer:
        return pl.BlockSpec(shape, index_map,
                            pipeline_mode=pl.Buffered(buffer_count=1))
    return pl.BlockSpec(shape, index_map)


def _vmem_limit_bytes(resident_bytes):
    """Generation-aware VMEM request: estimate + slack, capped below capacity."""
    cap = 64 * 1024 * 1024                      # v7x per-TensorCore floor
    try:
        cap = int(getattr(pltpu.get_tpu_info(), "vmem_capacity_bytes", cap))
    except Exception:
        pass
    ceiling = int(cap * 0.85)                   # headroom for internal scratch
    return int(min(max(resident_bytes + (2 << 20), 8 << 20), ceiling))


# --------------------------------------------------------------------------
# Kernel 1: batched input projection  xproj = x @ Wx_fused + b_fused
# --------------------------------------------------------------------------
def _xproj_kernel(x_ref, wx_ref, b_ref, out_ref):
    acc = jnp.dot(x_ref[...].astype(wx_ref.dtype), wx_ref[...],
                  preferred_element_type=jnp.float32)
    out_ref[...] = (acc + b_ref[...]).astype(out_ref.dtype)


# --------------------------------------------------------------------------
# Kernel 2: sequential LSTM recurrence over a block of T_BLK timesteps
# --------------------------------------------------------------------------
def _ch_lstm_recurrent_kernel(xproj_ref, len_ref, c0_ref, wh_ref, out_ref,
                              h_scr, c_scr):
    tb = pl.program_id(1)                # time-block index (innermost, serial)
    t_blk = out_ref.shape[0]
    d = h_scr.shape[-1]                  # d_pad

    # Initial state per batch tile: c = c0 (broadcast), h = tanh(c0).
    @pl.when(tb == 0)
    def _():
        c_init = jnp.broadcast_to(c0_ref[...], c_scr.shape)
        c_scr[...] = c_init
        h_scr[...] = jnp.tanh(c_init)

    lens = len_ref[...]                  # (b_tile, 1) int32 -- one vreg
    t0 = tb * t_blk

    def step(s, carry):
        h, c = carry
        # Per-step VMEM loads (not hoisted) keep vreg pressure low; the MXU
        # streams the VMEM-resident Wh and Mosaic pipelines the vld's.
        gates = (xproj_ref[s].astype(jnp.float32)
                 + jnp.dot(h.astype(wh_ref.dtype), wh_ref[...],
                           preferred_element_type=jnp.float32))
        i_g = jax.nn.sigmoid(gates[:, 0 * d:1 * d])
        f_g = jax.nn.sigmoid(gates[:, 1 * d:2 * d])
        g_g = jnp.tanh(gates[:, 2 * d:3 * d])
        o_g = jax.nn.sigmoid(gates[:, 3 * d:4 * d])
        c_new = f_g * c + i_g * g_g
        h_new = o_g * jnp.tanh(c_new)
        # Zero h where t >= length (PyTorch mutates the aliased state h too).
        h_new = jnp.where((t0 + s) < lens, h_new, 0.0)
        out_ref[s] = h_new.astype(out_ref.dtype)
        return (h_new, c_new)

    h_fin, c_fin = lax.fori_loop(0, t_blk, step, (h_scr[...], c_scr[...]),
                                 unroll=True)
    h_scr[...] = h_fin
    c_scr[...] = c_fin


# --------------------------------------------------------------------------
# Wrapper
# --------------------------------------------------------------------------
def _ch_lstm_forward_impl(batch, lengths, params, t_blk, b_tile, matmul_dtype,
                          xproj_dtype, single_buffer_invariants):
    T, B, D_in = batch.shape
    D_out = params["c0"].shape[-1]
    f32 = jnp.float32
    if xproj_dtype is None:
        xproj_dtype = matmul_dtype

    d_pad = _round_up(D_out, 128)            # lane-dense gate/output width
    if b_tile is None:
        # Big-M rows for the per-step MXU dot (when batch allows).
        b_tile = min(_round_up(B, 8), 128)
    b_pad = _round_up(B, b_tile)
    t_blk = max(1, min(t_blk, T))
    t_pad = _round_up(T, t_blk)
    g = 4 * d_pad
    pad_d = d_pad - D_out

    msize = jnp.dtype(matmul_dtype).itemsize
    xsize = jnp.dtype(xproj_dtype).itemsize
    osize = jnp.dtype(batch.dtype).itemsize
    inv_bufs = 1 if single_buffer_invariants else 2

    # ---- fused, padded parameters (gate order i, f, c, o) ----
    def fuse(w):                          # (4, d_lead, D_out) -> (d_lead, 4*d_pad)
        w = jnp.pad(w.astype(f32), ((0, 0), (0, 0), (0, pad_d)))
        return jnp.transpose(w, (1, 0, 2)).reshape(w.shape[1], g)

    wx_f = fuse(params["wx"]).astype(matmul_dtype)                  # (D_in, G)
    wh_f = fuse(jnp.pad(params["wh"].astype(f32),
                        ((0, 0), (0, pad_d), (0, 0)))
                ).astype(matmul_dtype)                              # (D_pad, G)
    b_f = fuse(params["b"])                                         # (1, G) f32
    c0_p = jnp.pad(params["c0"].astype(f32), (0, pad_d)).reshape(1, d_pad)

    # ---- padded inputs ----
    x_pad = jnp.pad(batch.astype(f32),
                    ((0, t_pad - T), (0, b_pad - B), (0, 0)))
    len_pad = jnp.pad(lengths.astype(jnp.int32), (0, b_pad - B)
                      ).reshape(b_pad, 1)

    # ---- kernel 1: hoisted x-projection (batch-parallel, one big matmul) ----
    rows = t_pad * b_pad
    r_blk = t_blk * b_pad
    x2d = x_pad.reshape(rows, D_in)
    est1 = (2 * r_blk * max(D_in, 128) * 4        # x blocks (double-buffered)
            + 2 * r_blk * g * xsize               # output blocks
            + inv_bufs * _round_up(D_in, 8) * g * msize   # fused Wx
            + inv_bufs * 8 * g * 4)               # bias (sublane-padded)
    xproj2d = pl.pallas_call(
        _xproj_kernel,
        out_shape=jax.ShapeDtypeStruct((rows, g), xproj_dtype),
        grid_spec=pltpu.PrefetchScalarGridSpec(
            num_scalar_prefetch=0,
            grid=(rows // r_blk,),
            in_specs=[
                pl.BlockSpec((r_blk, D_in), lambda r: (r, 0)),
                _invariant_spec((D_in, g), lambda r: (0, 0),
                                single_buffer_invariants),
                _invariant_spec((1, g), lambda r: (0, 0),
                                single_buffer_invariants),
            ],
            out_specs=pl.BlockSpec((r_blk, g), lambda r: (r, 0)),
        ),
        compiler_params=pltpu.CompilerParams(
            dimension_semantics=("parallel",),
            vmem_limit_bytes=_vmem_limit_bytes(est1)),
    )(x2d, wx_f, b_f)
    xproj = xproj2d.reshape(t_pad, b_pad, g)

    # ---- kernel 2: sequential recurrence, time-blocked ----
    est2 = (2 * t_blk * b_tile * g * xsize        # xproj blocks (double-buffered)
            + 2 * t_blk * b_tile * d_pad * osize  # output blocks
            + inv_bufs * d_pad * g * msize        # fused Wh
            + inv_bufs * 8 * d_pad * 4            # c0 (sublane-padded)
            + 2 * b_tile * 128 * 4                # lengths (lane-padded)
            + 2 * b_tile * d_pad * 4)             # h/c carry scratch
    out_pad = pl.pallas_call(
        _ch_lstm_recurrent_kernel,
        out_shape=jax.ShapeDtypeStruct((t_pad, b_pad, d_pad), batch.dtype),
        grid_spec=pltpu.PrefetchScalarGridSpec(
            num_scalar_prefetch=0,
            grid=(b_pad // b_tile, t_pad // t_blk),   # time innermost, serial
            in_specs=[
                pl.BlockSpec((t_blk, b_tile, g), lambda bi, ti: (ti, bi, 0)),
                pl.BlockSpec((b_tile, 1), lambda bi, ti: (bi, 0)),
                _invariant_spec((1, d_pad), lambda bi, ti: (0, 0),
                                single_buffer_invariants),
                _invariant_spec((d_pad, g), lambda bi, ti: (0, 0),
                                single_buffer_invariants),
            ],
            out_specs=pl.BlockSpec((t_blk, b_tile, d_pad),
                                   lambda bi, ti: (ti, bi, 0)),
            scratch_shapes=[
                pltpu.VMEM((b_tile, d_pad), jnp.float32),   # h carry
                pltpu.VMEM((b_tile, d_pad), jnp.float32),   # c carry
            ],
        ),
        compiler_params=pltpu.CompilerParams(
            # The h/c carry in VMEM scratch requires the time axis to stay
            # innermost and "arbitrary" (never sharded across cores).
            # TODO(synk): try pltpu.CORE_PARALLEL on the batch axis on v7x
            # once b_pad // b_tile >= 2.
            dimension_semantics=("parallel", "arbitrary"),
            vmem_limit_bytes=_vmem_limit_bytes(est2)),
    )(xproj, len_pad, c0_p, wh_f)

    return out_pad[:T, :B, :D_out]


def ch_lstm_forward(batch, lengths, params, *, t_blk=16, b_tile=None,
                    matmul_dtype=jnp.bfloat16, xproj_dtype=None,
                    single_buffer_invariants=True):
    """batch: (T, B, D_in) float32, lengths: (B,) int.  Returns (T, B, D_out)."""
    try:
        return _ch_lstm_forward_impl(batch, lengths, params, t_blk, b_tile,
                                     matmul_dtype, xproj_dtype,
                                     single_buffer_invariants)
    except Exception:
        if not single_buffer_invariants:
            raise
        # Fallback if this jax build rejects pipeline_mode=pl.Buffered(1).
        return _ch_lstm_forward_impl(batch, lengths, params, t_blk, b_tile,
                                     matmul_dtype, xproj_dtype, False)


# --------------------------------------------------------------------------
# Parameters & pure-JAX reference (mirrors the PyTorch module)
# --------------------------------------------------------------------------
def init_params(key, input_dims, output_dims):
    """Deterministic synthetic parameters, PyTorch nn.Linear shapes pre-split."""
    k = jax.random.split(key, 9)
    d_cat = input_dims + output_dims
    # PyTorch layout: W_* is (D_out, D_in + D_out); y = x @ W.T + b
    gates_w = [0.1 * jax.random.normal(k[i], (output_dims, d_cat), jnp.float32)
               for i in range(4)]                                   # i, f, c, o
    gates_b = [0.1 * jax.random.normal(k[4 + i], (output_dims,), jnp.float32)
               for i in range(4)]
    c0 = 0.1 * jax.random.normal(k[8], (output_dims,), jnp.float32)

    wx = jnp.stack([w[:, :input_dims].T for w in gates_w], axis=0)   # (4, D_in, D_out)
    wh = jnp.stack([w[:, input_dims:].T for w in gates_w], axis=0)   # (4, D_out, D_out)
    b = jnp.stack([bb.reshape(1, output_dims) for bb in gates_b], axis=0)
    return {"wx": wx, "wh": wh, "b": b, "c0": c0}


def ch_lstm_reference(batch, lengths, params):
    """Pure-JAX reference replicating the PyTorch forward (backward=False)."""
    T, B, _ = batch.shape
    D_out = params["c0"].shape[-1]
    c = jnp.broadcast_to(params["c0"], (B, D_out))
    h = jnp.tanh(c)

    def step(carry, inputs):
        h, c = carry
        x_t, t = inputs

        def gate(g):
            return x_t @ params["wx"][g] + h @ params["wh"][g] + params["b"][g]

        i = jax.nn.sigmoid(gate(0))
        f = jax.nn.sigmoid(gate(1))
        g_ = jnp.tanh(gate(2))
        o = jax.nn.sigmoid(gate(3))
        c = f * c + i * g_
        h = o * jnp.tanh(c)
        mask = (t < lengths)[:, None]
        h = jnp.where(mask, h, 0.0)   # in-place masking aliases state h
        return (h, c), h

    (_, _), outs = lax.scan(step, (h, c), (batch, jnp.arange(T, dtype=jnp.int32)))
    return outs


if __name__ == "__main__":
    T, B, D_in, D_out = 8, 4, 16, 32

    key = jax.random.PRNGKey(0)
    k_batch, k_params = jax.random.split(key)
    batch = jax.random.normal(k_batch, (T, B, D_in), jnp.float32)
    lengths = jnp.array([8, 5, 3, 7], dtype=jnp.int32)
    params = init_params(k_params, D_in, D_out)

    ref = ch_lstm_reference(batch, lengths, params)

    # Full-f32 MXU path: tight check against the pure-JAX reference.
    out_f32 = jax.block_until_ready(
        ch_lstm_forward(batch, lengths, params,
                        matmul_dtype=jnp.float32, xproj_dtype=jnp.float32))
    assert out_f32.shape == (T, B, D_out)
    assert jnp.allclose(out_f32, ref, atol=1e-4, rtol=1e-4), "f32 mismatch"

    # Production path: bf16 MXU operands + bf16 xproj stream, f32 carry/math.
    out_bf16 = jax.block_until_ready(ch_lstm_forward(batch, lengths, params))
    assert out_bf16.shape == (T, B, D_out)
    assert jnp.allclose(out_bf16, ref, atol=3e-2, rtol=3e-2), "bf16 mismatch"

    print("KERNEL_OK")
</pallas_src>

<mosaic_0001>
module attributes {stable_mosaic.version = 11 : i64} {
  func.func @_xproj_kernel(%arg0: i32, %arg1: memref<64x16xf32, #tpu.memory_space<vmem>>, %arg2: memref<16x512xf32, #tpu.memory_space<vmem>>, %arg3: memref<1x512xf32, #tpu.memory_space<vmem>>, %arg4: memref<64x512xf32, #tpu.memory_space<vmem>>) attributes {dimension_semantics = [#tpu.dimension_semantics<parallel>], iteration_bounds = array<i64: 1>, scalar_prefetch = 0 : i64, scratch_operands = 0 : i64, tpu.core_type = #tpu.core_type<tc>, window_params = [{transform_indices = @transform_0, window_bounds = array<i64: 64, 16>}, {pipeline_mode = #tpu.pipeline_mode<synchronous>, transform_indices = @transform_1, window_bounds = array<i64: 16, 512>}, {pipeline_mode = #tpu.pipeline_mode<synchronous>, transform_indices = @transform_2, window_bounds = array<i64: 1, 512>}, {transform_indices = @transform_3, window_bounds = array<i64: 64, 512>}]} {
    %c0 = arith.constant 0 : index
    %c0_0 = arith.constant 0 : index
    %0 = vector.load %arg1[%c0, %c0_0] : memref<64x16xf32, #tpu.memory_space<vmem>>, vector<64x16xf32>
    %c0_1 = arith.constant 0 : index
    %c0_2 = arith.constant 0 : index
    %1 = vector.load %arg2[%c0_1, %c0_2] : memref<16x512xf32, #tpu.memory_space<vmem>>, vector<16x512xf32>
    %cst = arith.constant dense<0.000000e+00> : vector<64x512xf32>
    %2 = tpu.matmul %0, %1, %cst {dimension_numbers = #tpu.dot_dimension_numbers<[1], [0], [0], [1], [0, 0, 1, 1], [], []>} : vector<64x16xf32>, vector<16x512xf32>, vector<64x512xf32> -> vector<64x512xf32>
    %c0_3 = arith.constant 0 : index
    %c0_4 = arith.constant 0 : index
    %3 = vector.load %arg3[%c0_3, %c0_4] : memref<1x512xf32, #tpu.memory_space<vmem>>, vector<1x512xf32>
    %4 = vector.broadcast %3 : vector<1x512xf32> to vector<64x512xf32>
    %5 = arith.addf %2, %4 : vector<64x512xf32>
    %c0_5 = arith.constant 0 : index
    %c0_6 = arith.constant 0 : index
    %6 = vector.load %arg4[%c0_5, %c0_6] : memref<64x512xf32, #tpu.memory_space<vmem>>, vector<64x512xf32>
    tpu.vector_store %arg4[%c0_5, %c0_6], %5 {strides = array<i32>} : memref<64x512xf32, #tpu.memory_space<vmem>>, vector<64x512xf32>,
    return
  }
  func.func @transform_0(%arg0: i32) -> (i32, i32) {
    %c0_i32 = arith.constant 0 : i32
    %c0_i32_0 = arith.constant 0 : i32
    return %arg0, %c0_i32 : i32, i32
  }
  func.func @transform_1(%arg0: i32) -> (i32, i32) {
    %c0_i32 = arith.constant 0 : i32
    %c0_i32_0 = arith.constant 0 : i32
    %c0_i32_1 = arith.constant 0 : i32
    return %c0_i32, %c0_i32_0 : i32, i32
  }
  func.func @transform_2(%arg0: i32) -> (i32, i32) {
    %c0_i32 = arith.constant 0 : i32
    %c0_i32_0 = arith.constant 0 : i32
    %c0_i32_1 = arith.constant 0 : i32
    return %c0_i32, %c0_i32_0 : i32, i32
  }
  func.func @transform_3(%arg0: i32) -> (i32, i32) {
    %c0_i32 = arith.constant 0 : i32
    %c0_i32_0 = arith.constant 0 : i32
    return %arg0, %c0_i32 : i32, i32
  }
}

module attributes {stable_mosaic.version = 11 : i64} {
  func.func @_xproj_kernel(%arg0: i32, %arg1: memref<64x16xf32, #tpu.memory_space<vmem>>, %arg2: memref<16x512xf32, #tpu.memory_space<vmem>>, %arg3: memref<1x512xf32, #tpu.memory_space<vmem>>, %arg4: memref<64x512xf32, #tpu.memory_space<vmem>>) attributes {dimension_semantics = [#tpu.dimension_semantics<parallel>], iteration_bounds = array<i64: 1>, scalar_prefetch = 0 : i64, scratch_operands = 0 : i64, tpu.core_type = #tpu.core_type<tc>, window_params = [{transform_indices = @transform_0, window_bounds = array<i64: 64, 16>}, {pipeline_mode = #tpu.pipeline_mode<synchronous>, transform_indices = @transform_1, window_bounds = array<i64: 16, 512>}, {pipeline_mode = #tpu.pipeline_mode<synchronous>, transform_indices = @transform_2, window_bounds = array<i64: 1, 512>}, {transform_indices = @transform_3, window_bounds = array<i64: 64, 512>}]} {
    %c0 = arith.constant 0 : index
    %c0_0 = arith.constant 0 : index
    %0 = vector.load %arg1[%c0, %c0_0] : memref<64x16xf32, #tpu.memory_space<vmem>>, vector<64x16xf32>
    %c0_1 = arith.constant 0 : index
    %c0_2 = arith.constant 0 : index
    %1 = vector.load %arg2[%c0_1, %c0_2] : memref<16x512xf32, #tpu.memory_space<vmem>>, vector<16x512xf32>
    %cst = arith.constant dense<0.000000e+00> : vector<64x512xf32>
    %2 = tpu.matmul %0, %1, %cst {dimension_numbers = #tpu.dot_dimension_numbers<[1], [0], [0], [1], [0, 0, 1, 1], [], []>} : vector<64x16xf32>, vector<16x512xf32>, vector<64x512xf32> -> vector<64x512xf32>
    %c0_3 = arith.constant 0 : index
    %c0_4 = arith.constant 0 : index
    %3 = vector.load %arg3[%c0_3, %c0_4] : memref<1x512xf32, #tpu.memory_space<vmem>>, vector<1x512xf32>
    %4 = vector.broadcast %3 : vector<1x512xf32> to vector<64x512xf32>
    %5 = arith.addf %2, %4 : vector<64x512xf32>
    %c0_5 = arith.constant 0 : index
    %c0_6 = arith.constant 0 : index
    %6 = vector.load %arg4[%c0_5, %c0_6] : memref<64x512xf32, #tpu.memory_space<vmem>>, vector<64x512xf32>
    tpu.vector_store %arg4[%c0_5, %c0_6], %5 {strides = array<i32>} : memref<64x512xf32, #tpu.memory_space<vmem>>, vector<64x512xf32>,
    return
  }
  func.func @transform_0(%arg0: i32) -> (i32, i32) {
    %c0_i32 = arith.constant 0 : i32
    %c0_i32_0 = arith.constant 0 : i32
    return %arg0, %c0_i32 : i32, i32
  }
  func.func @transform_1(%arg0: i32) -> (i32, i32) {
    %c0_i32 = arith.constant 0 : i32
    %c0_i32_0 = arith.constant 0 : i32
    %c0_i32_1 = arith.constant 0 : i32
    return %c0_i32, %c0_i32_0 : i32, i32
  }
  func.func @transform_2(%arg0: i32) -> (i32, i32) {
    %c0_i32 = arith.constant 0 : i32
    %c0_i32_0 = arith.constant 0 : i32
    %c0_i32_1 = arith.constant 0 : i32
    return %c0_i32, %c0_i32_0 : i32, i32
  }
  func.func @transform_3(%arg0: i32) -> (i32, i32) {
    %c0_i32 = arith.constant 0 : i32
    %c0_i32_0 = arith.constant 0 : i32
    return %arg0, %c0_i32 : i32, i32
  }
}

</mosaic_0001>

<llo_original>
// kernel: tpu_custom_call.1
$region0: #{tpu_custom_call.1}
  #allocation0 [shape = 'u32[]', space=smem, size = 0x4, offset = 0x4, fixed_abs, tag = 'smem constant byte address 0x4 - core index']
  #allocation1 [shape = 'u32[144,128]{1,0:T(1,128)}', space=vmem, size = 0x12000, scoped, tag = 'internal scratch']
  %s0 = inlined_call_operand.vmem [shape: f32[64,16], index: 0, kind: input, shape index: {}]
  %s1 = inlined_call_operand.vmem [shape: f32[16,512], index: 1, kind: input, shape index: {}]
  %s2 = inlined_call_operand.vmem [shape: f32[1,512], index: 2, kind: input, shape index: {}]
  %s3 = inlined_call_operand.hbm [shape: f32[64,512], index: 3, kind: output, shape index: {}]
  %s4 = sld [smem:[#allocation0]]
  $region22: #{tpu_custom_call.1} parent=0
    _
  %s6 = ssub.s32 1, %s4
  %s7 = scalar_select 0, %s6, %s4
  $region1: #{tpu_custom_call.1} parent=0
    #allocation2 [shape = 'u8[131072]{0}', space=vmem, size = 0x20000, scoped, tag = 'output window, operand 0, single buffered']
    #allocation3 [shape = 's32[1]{0}', space=sflag, size = 0x4, scoped, tag = 'scoped memory for tpu_custom_call.1']
    %8 = vsyncpa [#allocation3], 0
    // Predicated region
    $region2: #{tpu_custom_call.1} parent=1 // pred_check
      _
    $region3: #{tpu_custom_call.1} parent=1 // pred_check_branch
      %10 = sbr.rel (0) target = $region5
    $region4: #{tpu_custom_call.1} parent=1 // pred_region
      _
    $region5: #{tpu_custom_call.1} parent=1 // pred_fallthru
      _
    // Predicated region
    $region6: #{tpu_custom_call.1} parent=1 // pred_check
      _
    $region7: #{tpu_custom_call.1} parent=1 // pred_check_branch
      %12 = sbr.rel (0) target = $region9
    $region8: #{tpu_custom_call.1} parent=1 // pred_region
      _
    $region9: #{tpu_custom_call.1} parent=1 // pred_fallthru
      _
    // Predicated region
    $region10: #{tpu_custom_call.1} parent=1 // pred_check
      _
    $region11: #{tpu_custom_call.1} parent=1 // pred_check_branch
      %14 = sbr.rel (0) target = $region13
    $region12: #{tpu_custom_call.1} parent=1 // pred_region
      _
    $region13: #{tpu_custom_call.1} parent=1 // pred_fallthru
      _
    %v15 = vld [vmem:[%s0] sm:$0xff]
    %v16 = vld [vmem:[%s0 + $0x8] sm:$0xff]
    %v17 = vld [vmem:[%s0 + $0x10] sm:$0xff]
    %v18 = vld [vmem:[%s0 + $0x18] sm:$0xff]
    %v19 = vld [vmem:[%s0 + $0x20] sm:$0xff]
    %v20 = vld [vmem:[%s0 + $0x28] sm:$0xff]
    %v21 = vld [vmem:[%s0 + $0x30] sm:$0xff]
    %v22 = vld [vmem:[%s0 + $0x38] sm:$0xff]
    %v23 = vld [vmem:[%s1] sm:$0xff]
    %v24 = vld [vmem:[%s1 + $0x8] sm:$0xff]
    %v25 = vld [vmem:[%s1 + $0x10] sm:$0xff]
    %v26 = vld [vmem:[%s1 + $0x18] sm:$0xff]
    %v27 = vld [vmem:[%s1 + $0x20] sm:$0xff]
    %v28 = vld [vmem:[%s1 + $0x28] sm:$0xff]
    %v29 = vld [vmem:[%s1 + $0x30] sm:$0xff]
    %v30 = vld [vmem:[%s1 + $0x38] sm:$0xff]
    %v31 = vld [vmem:[%s2] sm:$0xf]
    %v33 = vlaneseq
    %v34 = vshrl.u32 %v33, 7
    %v35 = vsub.s32 0, %v34
    %v36 = vrot.slane %v31, %v35
    %v37 = vlaneseq
    %v38 = vshrl.u32 %v37, 7
    %v39 = vsub.s32 1, %v38
    %v40 = vrot.slane %v31, %v39
    %v41 = vlaneseq
    %v42 = vshrl.u32 %v41, 7
    %v43 = vsub.s32 2, %v42
    %v44 = vrot.slane %v31, %v43
    %v45 = vlaneseq
    %v46 = vshrl.u32 %v45, 7
    %v47 = vsub.s32 3, %v46
    %v48 = vrot.slane %v31, %v47
    %vm53 = vcmask 130048
    %v55 = vsel %vm53, %v15, 0
    %v58 = vsel %vm53, %v16, 0
    %v61 = vsel %vm53, %v17, 0
    %v64 = vsel %vm53, %v18, 0
    %v67 = vsel %vm53, %v19, 0
    %v70 = vsel %vm53, %v20, 0
    %v73 = vsel %vm53, %v21, 0
    %v76 = vsel %vm53, %v22, 0
    %78 = vmatprep.subr.mxu0 %v24
    %79 = vmatpush1.msra.mxu0 %v23
    %80 = vmatprep.subr.mxu0 %v28
    %81 = vmatpush1.msra.mxu0 %v27
    %82 = vmatprep.subr.mxu0 0.0
    %83 = vmatpush1.msra.mxu0 0.0
    %84 = vmatprep.subr.mxu0 0.0
    %85 = vmatpush1.msra.mxu0 0.0
    %86 = vmatprep.subr.mxu0 0.0
    %87 = vmatpush1.msra.mxu0 0.0
    %88 = vmatprep.subr.mxu0 0.0
    %89 = vmatpush1.msra.mxu0 0.0
    %90 = vmatprep.subr.mxu0 0.0
    %91 = vmatpush1.msra.mxu0 0.0
    %92 = vmatprep.subr.mxu0 0.0
    %93 = vmatpush1.msra.mxu0 0.0
    %94 = vmatprep.subr.mxu0 0.0
    %95 = vmatpush1.msra.mxu0 0.0
    %96 = vmatprep.subr.mxu0 0.0
    %97 = vmatpush1.msra.mxu0 0.0
    %98 = vmatprep.subr.mxu0 0.0
    %99 = vmatpush1.msra.mxu0 0.0
    %100 = vmatprep.subr.mxu0 0.0
    %101 = vmatpush1.msra.mxu0 0.0
    %102 = vmatprep.subr.mxu0 0.0
    %103 = vmatpush1.msra.mxu0 0.0
    %104 = vmatprep.subr.mxu0 0.0
    %105 = vmatpush1.msra.mxu0 0.0
    %106 = vmatprep.subr.mxu0 0.0
    %107 = vmatpush1.msra.mxu0 0.0
    %108 = vmatprep.subr.mxu0 0.0
    %109 = vmatpush1.msra.mxu0 0.0
    %110 = vmatprep.subr.mxu0 0.0
    %111 = vmatpush1.msra.mxu0 0.0
    %112 = vmatprep.subr.mxu0 0.0
    %113 = vmatpush1.msra.mxu0 0.0
    %114 = vmatprep.subr.mxu0 0.0
    %115 = vmatpush1.msra.mxu0 0.0
    %116 = vmatprep.subr.mxu0 0.0
    %117 = vmatpush1.msra.mxu0 0.0
    %118 = vmatprep.subr.mxu0 0.0
    %119 = vmatpush1.msra.mxu0 0.0
    %120 = vmatprep.subr.mxu0 0.0
    %121 = vmatpush1.msra.mxu0 0.0
    %122 = vmatprep.subr.mxu0 0.0
    %123 = vmatpush1.msra.mxu0 0.0
    %124 = vmatprep.subr.mxu0 0.0
    %125 = vmatpush1.msra.mxu0 0.0
    %126 = vmatprep.subr.mxu0 0.0
    %127 = vmatpush1.msra.mxu0 0.0
    %128 = vmatprep.subr.mxu0 0.0
    %129 = vmatpush1.msra.mxu0 0.0
    %130 = vmatprep.subr.mxu0 0.0
    %131 = vmatpush1.msra.mxu0 0.0
    %132 = vmatprep.subr.mxu0 0.0
    %133 = vmatpush1.msra.mxu0 0.0
    %134 = vmatprep.subr.mxu0 0.0
    %135 = vmatpush1.msra.mxu0 0.0
    %136 = vmatprep.subr.mxu0 0.0
    %137 = vmatpush1.msra.mxu0 0.0
    %138 = vmatprep.subr.mxu0 0.0
    %139 = vmatpush1.msra.mxu0 0.0
    %140 = vmatprep.subr.mxu0 0.0
    %141 = vmatpush1.msra.mxu0 0.0
    %142 = vmatprep.mubr.f32.mxu0 0.0
    %143 = vmatmul.mubr.f32.gmra.mrb[0].mxu0 %v55
    %v144 = vpop.f32.mrb[0].mxu0
    %v145 = vadd.f32 %v36, %v144
    %v146 = vpop.f32.mrb[0].mxu0
    %v147 = vadd.f32 %v40, %v146
    %148 = vmatprep.mubr.f32.mxu0 0.0
    %149 = vmatmul.mubr.f32.gmra.mrb[0].mxu0 %v58
    %v150 = vpop.f32.mrb[0].mxu0
    %v151 = vadd.f32 %v36, %v150
    %v152 = vpop.f32.mrb[0].mxu0
    %v153 = vadd.f32 %v40, %v152
    %154 = vmatprep.mubr.f32.mxu0 0.0
    %155 = vmatmul.mubr.f32.gmra.mrb[0].mxu0 %v61
    %v156 = vpop.f32.mrb[0].mxu0
    %v157 = vadd.f32 %v36, %v156
    %v158 = vpop.f32.mrb[0].mxu0
    %v159 = vadd.f32 %v40, %v158
    %160 = vmatprep.mubr.f32.mxu0 0.0
    %161 = vmatmul.mubr.f32.gmra.mrb[0].mxu0 %v64
    %v162 = vpop.f32.mrb[0].mxu0
    %v163 = vadd.f32 %v36, %v162
    %v164 = vpop.f32.mrb[0].mxu0
    %v165 = vadd.f32 %v40, %v164
    %166 = vmatprep.mubr.f32.mxu0 0.0
    %167 = vmatmul.mubr.f32.gmra.mrb[0].mxu0 %v67
    %v168 = vpop.f32.mrb[0].mxu0
    %v169 = vadd.f32 %v36, %v168
    %v170 = vpop.f32.mrb[0].mxu0
    %v171 = vadd.f32 %v40, %v170
    %172 = vmatprep.mubr.f32.mxu0 0.0
    %173 = vmatmul.mubr.f32.gmra.mrb[0].mxu0 %v70
    %v174 = vpop.f32.mrb[0].mxu0
    %v175 = vadd.f32 %v36, %v174
    %v176 = vpop.f32.mrb[0].mxu0
    %v177 = vadd.f32 %v40, %v176
    %178 = vmatprep.mubr.f32.mxu0 0.0
    %179 = vmatmul.mubr.f32.gmra.mrb[0].mxu0 %v73
    %v180 = vpop.f32.mrb[0].mxu0
    %v181 = vadd.f32 %v36, %v180
    %v182 = vpop.f32.mrb[0].mxu0
    %v183 = vadd.f32 %v40, %v182
    %184 = vmatprep.mubr.f32.mxu0 0.0
    %185 = vmatmul.mubr.f32.gmra.mrb[0].mxu0 %v76
    %v186 = vpop.f32.mrb[0].mxu0
    %v187 = vadd.f32 %v36, %v186
    %v188 = vpop.f32.mrb[0].mxu0
    %v189 = vadd.f32 %v40, %v188
    %190 = vdwg.mxu0
    %191 = vmatprep.subr.mxu0 %v26
    %192 = vmatpush1.msra.mxu0 %v25
    %193 = vmatprep.subr.mxu0 %v30
    %194 = vmatpush1.msra.mxu0 %v29
    %195 = vmatprep.subr.mxu0 0.0
    %196 = vmatpush1.msra.mxu0 0.0
    %197 = vmatprep.subr.mxu0 0.0
    %198 = vmatpush1.msra.mxu0 0.0
    %199 = vmatprep.subr.mxu0 0.0
    %200 = vmatpush1.msra.mxu0 0.0
    %201 = vmatprep.subr.mxu0 0.0
    %202 = vmatpush1.msra.mxu0 0.0
    %203 = vmatprep.subr.mxu0 0.0
    %204 = vmatpush1.msra.mxu0 0.0
    %205 = vmatprep.subr.mxu0 0.0
    %206 = vmatpush1.msra.mxu0 0.0
    %207 = vmatprep.subr.mxu0 0.0
    %208 = vmatpush1.msra.mxu0 0.0
    %209 = vmatprep.subr.mxu0 0.0
    %210 = vmatpush1.msra.mxu0 0.0
    %211 = vmatprep.subr.mxu0 0.0
    %212 = vmatpush1.msra.mxu0 0.0
    %213 = vmatprep.subr.mxu0 0.0
    %214 = vmatpush1.msra.mxu0 0.0
    %215 = vmatprep.subr.mxu0 0.0
    %216 = vmatpush1.msra.mxu0 0.0
    %217 = vmatprep.subr.mxu0 0.0
    %218 = vmatpush1.msra.mxu0 0.0
    %219 = vmatprep.subr.mxu0 0.0
    %220 = vmatpush1.msra.mxu0 0.0
    %221 = vmatprep.subr.mxu0 0.0
    %222 = vmatpush1.msra.mxu0 0.0
    %223 = vmatprep.subr.mxu0 0.0
    %224 = vmatpush1.msra.mxu0 0.0
    %225 = vmatprep.subr.mxu0 0.0
    %226 = vmatpush1.msra.mxu0 0.0
    %227 = vmatprep.subr.mxu0 0.0
    %228 = vmatpush1.msra.mxu0 0.0
    %229 = vmatprep.subr.mxu0 0.0
    %230 = vmatpush1.msra.mxu0 0.0
    %231 = vmatprep.subr.mxu0 0.0
    %232 = vmatpush1.msra.mxu0 0.0
    %233 = vmatprep.subr.mxu0 0.0
    %234 = vmatpush1.msra.mxu0 0.0
    %235 = vmatprep.subr.mxu0 0.0
    %236 = vmatpush1.msra.mxu0 0.0
    %237 = vmatprep.subr.mxu0 0.0
    %238 = vmatpush1.msra.mxu0 0.0
    %239 = vmatprep.subr.mxu0 0.0
    %240 = vmatpush1.msra.mxu0 0.0
    %241 = vmatprep.subr.mxu0 0.0
    %242 = vmatpush1.msra.mxu0 0.0
    %243 = vmatprep.subr.mxu0 0.0
    %244 = vmatpush1.msra.mxu0 0.0
    %245 = vmatprep.subr.mxu0 0.0
    %246 = vmatpush1.msra.mxu0 0.0
    %247 = vmatprep.subr.mxu0 0.0
    %248 = vmatpush1.msra.mxu0 0.0
    %249 = vmatprep.subr.mxu0 0.0
    %250 = vmatpush1.msra.mxu0 0.0
    %251 = vmatprep.subr.mxu0 0.0
    %252 = vmatpush1.msra.mxu0 0.0
    %253 = vmatprep.subr.mxu0 0.0
    %254 = vmatpush1.msra.mxu0 0.0
    %255 = vmatprep.mubr.f32.mxu0 0.0
    %256 = vmatmul.mubr.f32.gmra.mrb[0].mxu0 %v55
    %v257 = vpop.f32.mrb[0].mxu0
    %v258 = vadd.f32 %v44, %v257
    %v259 = vpop.f32.mrb[0].mxu0
    %v260 = vadd.f32 %v48, %v259
    %261 = vmatprep.mubr.f32.mxu0 0.0
    %262 = vmatmul.mubr.f32.gmra.mrb[0].mxu0 %v58
    %v263 = vpop.f32.mrb[0].mxu0
    %v264 = vadd.f32 %v44, %v263
    %v265 = vpop.f32.mrb[0].mxu0
    %v266 = vadd.f32 %v48, %v265
    %267 = vmatprep.mubr.f32.mxu0 0.0
    %268 = vmatmul.mubr.f32.gmra.mrb[0].mxu0 %v61
    %v269 = vpop.f32.mrb[0].mxu0
    %v270 = vadd.f32 %v44, %v269
    %v271 = vpop.f32.mrb[0].mxu0
    %v272 = vadd.f32 %v48, %v271
    %273 = vmatprep.mubr.f32.mxu0 0.0
    %274 = vmatmul.mubr.f32.gmra.mrb[0].mxu0 %v64
    %v275 = vpop.f32.mrb[0].mxu0
    %v276 = vadd.f32 %v44, %v275
    %v277 = vpop.f32.mrb[0].mxu0
    %v278 = vadd.f32 %v48, %v277
    %279 = vmatprep.mubr.f32.mxu0 0.0
    %280 = vmatmul.mubr.f32.gmra.mrb[0].mxu0 %v67
    %v281 = vpop.f32.mrb[0].mxu0
    %v282 = vadd.f32 %v44, %v281
    %v283 = vpop.f32.mrb[0].mxu0
    %v284 = vadd.f32 %v48, %v283
    %285 = vmatprep.mubr.f32.mxu0 0.0
    %286 = vmatmul.mubr.f32.gmra.mrb[0].mxu0 %v70
    %v287 = vpop.f32.mrb[0].mxu0
    %v288 = vadd.f32 %v44, %v287
    %v289 = vpop.f32.mrb[0].mxu0
    %v290 = vadd.f32 %v48, %v289
    %291 = vmatprep.mubr.f32.mxu0 0.0
    %292 = vmatmul.mubr.f32.gmra.mrb[0].mxu0 %v73
    %v293 = vpop.f32.mrb[0].mxu0
    %v294 = vadd.f32 %v44, %v293
    %v295 = vpop.f32.mrb[0].mxu0
    %v296 = vadd.f32 %v48, %v295
    %297 = vmatprep.mubr.f32.mxu0 0.0
    %298 = vmatmul.mubr.f32.gmra.mrb[0].mxu0 %v76
    %v299 = vpop.f32.mrb[0].mxu0
    %v300 = vadd.f32 %v44, %v299
    %v301 = vpop.f32.mrb[0].mxu0
    %v302 = vadd.f32 %v48, %v301
    %303 = vdwg.mxu0
    %304 = vst [vmem:[#allocation2] sm:$0xff] %v145
    %305 = vst [vmem:[#allocation2 + $0x8] sm:$0xff] %v147
    %306 = vst [vmem:[#allocation2 + $0x10] sm:$0xff] %v258
    %307 = vst [vmem:[#allocation2 + $0x18] sm:$0xff] %v260
    %308 = vst [vmem:[#allocation2 + $0x20] sm:$0xff] %v151
    %309 = vst [vmem:[#allocation2 + $0x28] sm:$0xff] %v153
    %310 = vst [vmem:[#allocation2 + $0x30] sm:$0xff] %v264
    %311 = vst [vmem:[#allocation2 + $0x38] sm:$0xff] %v266
    %312 = vst [vmem:[#allocation2 + $0x40] sm:$0xff] %v157
    %313 = vst [vmem:[#allocation2 + $0x48] sm:$0xff] %v159
    %314 = vst [vmem:[#allocation2 + $0x50] sm:$0xff] %v270
    %315 = vst [vmem:[#allocation2 + $0x58] sm:$0xff] %v272
    %316 = vst [vmem:[#allocation2 + $0x60] sm:$0xff] %v163
    %317 = vst [vmem:[#allocation2 + $0x68] sm:$0xff] %v165
    %318 = vst [vmem:[#allocation2 + $0x70] sm:$0xff] %v276
    %319 = vst [vmem:[#allocation2 + $0x78] sm:$0xff] %v278
    %320 = vst [vmem:[#allocation2 + $0x80] sm:$0xff] %v169
    %321 = vst [vmem:[#allocation2 + $0x88] sm:$0xff] %v171
    %322 = vst [vmem:[#allocation2 + $0x90] sm:$0xff] %v282
    %323 = vst [vmem:[#allocation2 + $0x98] sm:$0xff] %v284
    %324 = vst [vmem:[#allocation2 + $0xa0] sm:$0xff] %v175
    %325 = vst [vmem:[#allocation2 + $0xa8] sm:$0xff] %v177
    %326 = vst [vmem:[#allocation2 + $0xb0] sm:$0xff] %v288
    %327 = vst [vmem:[#allocation2 + $0xb8] sm:$0xff] %v290
    %328 = vst [vmem:[#allocation2 + $0xc0] sm:$0xff] %v181
    %329 = vst [vmem:[#allocation2 + $0xc8] sm:$0xff] %v183
    %330 = vst [vmem:[#allocation2 + $0xd0] sm:$0xff] %v294
    %331 = vst [vmem:[#allocation2 + $0xd8] sm:$0xff] %v296
    %332 = vst [vmem:[#allocation2 + $0xe0] sm:$0xff] %v187
    %333 = vst [vmem:[#allocation2 + $0xe8] sm:$0xff] %v189
    %334 = vst [vmem:[#allocation2 + $0xf0] sm:$0xff] %v300
    %335 = vst [vmem:[#allocation2 + $0xf8] sm:$0xff] %v302
    // Predicated region
    $region14: #{tpu_custom_call.1} parent=1 // pred_check
      _
    $region15: #{tpu_custom_call.1} parent=1 // pred_check_branch
      %337 = sbr.rel (0) target = $region17
    $region16: #{tpu_custom_call.1} parent=1 // pred_region
      %s339 = ssub.s32 4096, 4096
      %340 = vsyncadd [#allocation3], %s339
      %s341 = sshll.u32 [#allocation2], 4
      %s342 = int_to_ptr.vmem [resolvable:$true] %s341
      %347 = dma.vmem_to_hbm [thread:$0]  %s342, 4096, %s3, [#allocation3], 512, 512, 32
    $region17: #{tpu_custom_call.1} parent=1 // pred_fallthru
      _
    // Predicated region
    $region18: #{tpu_custom_call.1} parent=1 // pred_check
      _
    $region19: #{tpu_custom_call.1} parent=1 // pred_check_branch
      %349 = sbr.rel (0) target = $region21
    $region20: #{tpu_custom_call.1} parent=1 // pred_region
      %350 = dma.done [#allocation3], 4096
    $region21: #{tpu_custom_call.1} parent=1 // pred_fallthru
      _
    %351 = vsyncpa [#allocation3], 1

// kernel: tpu_custom_call.1
$region0: #{tpu_custom_call.1}
  #allocation0 [shape = 'u32[]', space=smem, size = 0x4, offset = 0x4, fixed_abs, tag = 'smem constant byte address 0x4 - core index']
  #allocation1 [shape = 'u32[144,128]{1,0:T(1,128)}', space=vmem, size = 0x12000, scoped, tag = 'internal scratch']
  %s0 = inlined_call_operand.vmem [shape: f32[64,16], index: 0, kind: input, shape index: {}]
  %s1 = inlined_call_operand.vmem [shape: f32[16,512], index: 1, kind: input, shape index: {}]
  %s2 = inlined_call_operand.vmem [shape: f32[1,512], index: 2, kind: input, shape index: {}]
  %s3 = inlined_call_operand.hbm [shape: f32[64,512], index: 3, kind: output, shape index: {}]
  %s4 = sld [smem:[#allocation0]]
  $region22: #{tpu_custom_call.1} parent=0
    _
  %s6 = ssub.s32 1, %s4
  %s7 = scalar_select 0, %s6, %s4
  $region1: #{tpu_custom_call.1} parent=0
    #allocation2 [shape = 'u8[131072]{0}', space=vmem, size = 0x20000, scoped, tag = 'output window, operand 0, single buffered']
    #allocation3 [shape = 's32[1]{0}', space=sflag, size = 0x4, scoped, tag = 'scoped memory for tpu_custom_call.1']
    %8 = vsyncpa [#allocation3], 0
    // Predicated region
    $region2: #{tpu_custom_call.1} parent=1 // pred_check
      _
    $region3: #{tpu_custom_call.1} parent=1 // pred_check_branch
      %10 = sbr.rel (0) target = $region5
    $region4: #{tpu_custom_call.1} parent=1 // pred_region
      _
    $region5: #{tpu_custom_call.1} parent=1 // pred_fallthru
      _
    // Predicated region
    $region6: #{tpu_custom_call.1} parent=1 // pred_check
      _
    $region7: #{tpu_custom_call.1} parent=1 // pred_check_branch
      %12 = sbr.rel (0) target = $region9
    $region8: #{tpu_custom_call.1} parent=1 // pred_region
      _
    $region9: #{tpu_custom_call.1} parent=1 // pred_fallthru
      _
    // Predicated region
    $region10: #{tpu_custom_call.1} parent=1 // pred_check
      _
    $region11: #{tpu_custom_call.1} parent=1 // pred_check_branch
      %14 = sbr.rel (0) target = $region13
    $region12: #{tpu_custom_call.1} parent=1 // pred_region
      _
    $region13: #{tpu_custom_call.1} parent=1 // pred_fallthru
      _
    %v15 = vld [vmem:[%s0] sm:$0xff]
    %v16 = vld [vmem:[%s0 + $0x8] sm:$0xff]
    %v17 = vld [vmem:[%s0 + $0x10] sm:$0xff]
    %v18 = vld [vmem:[%s0 + $0x18] sm:$0xff]
    %v19 = vld [vmem:[%s0 + $0x20] sm:$0xff]
    %v20 = vld [vmem:[%s0 + $0x28] sm:$0xff]
    %v21 = vld [vmem:[%s0 + $0x30] sm:$0xff]
    %v22 = vld [vmem:[%s0 + $0x38] sm:$0xff]
    %v23 = vld [vmem:[%s1] sm:$0xff]
    %v24 = vld [vmem:[%s1 + $0x8] sm:$0xff]
    %v25 = vld [vmem:[%s1 + $0x10] sm:$0xff]
    %v26 = vld [vmem:[%s1 + $0x18] sm:$0xff]
    %v27 = vld [vmem:[%s1 + $0x20] sm:$0xff]
    %v28 = vld [vmem:[%s1 + $0x28] sm:$0xff]
    %v29 = vld [vmem:[%s1 + $0x30] sm:$0xff]
    %v30 = vld [vmem:[%s1 + $0x38] sm:$0xff]
    %v31 = vld [vmem:[%s2] sm:$0xf]
    %v33 = vlaneseq
    %v34 = vshrl.u32 %v33, 7
    %v35 = vsub.s32 0, %v34
    %v36 = vrot.slane %v31, %v35
    %v37 = vlaneseq
    %v38 = vshrl.u32 %v37, 7
    %v39 = vsub.s32 1, %v38
    %v40 = vrot.slane %v31, %v39
    %v41 = vlaneseq
    %v42 = vshrl.u32 %v41, 7
    %v43 = vsub.s32 2, %v42
    %v44 = vrot.slane %v31, %v43
    %v45 = vlaneseq
    %v46 = vshrl.u32 %v45, 7
    %v47 = vsub.s32 3, %v46
    %v48 = vrot.slane %v31, %v47
    %vm53 = vcmask 130048
    %v55 = vsel %vm53, %v15, 0
    %v58 = vsel %vm53, %v16, 0
    %v61 = vsel %vm53, %v17, 0
    %v64 = vsel %vm53, %v18, 0
    %v67 = vsel %vm53, %v19, 0
    %v70 = vsel %vm53, %v20, 0
    %v73 = vsel %vm53, %v21, 0
    %v76 = vsel %vm53, %v22, 0
    %78 = vmatprep.subr.mxu0 %v24
    %79 = vmatpush1.msra.mxu0 %v23
    %80 = vmatprep.subr.mxu0 %v28
    %81 = vmatpush1.msra.mxu0 %v27
    %82 = vmatprep.subr.mxu0 0.0
    %83 = vmatpush1.msra.mxu0 0.0
    %84 = vmatprep.subr.mxu0 0.0
    %85 = vmatpush1.msra.mxu0 0.0
    %86 = vmatprep.subr.mxu0 0.0
    %87 = vmatpush1.msra.mxu0 0.0
    %88 = vmatprep.subr.mxu0 0.0
    %89 = vmatpush1.msra.mxu0 0.0
    %90 = vmatprep.subr.mxu0 0.0
    %91 = vmatpush1.msra.mxu0 0.0
    %92 = vmatprep.subr.mxu0 0.0
    %93 = vmatpush1.msra.mxu0 0.0
    %94 = vmatprep.subr.mxu0 0.0
    %95 = vmatpush1.msra.mxu0 0.0
    %96 = vmatprep.subr.mxu0 0.0
    %97 = vmatpush1.msra.mxu0 0.0
    %98 = vmatprep.subr.mxu0 0.0
    %99 = vmatpush1.msra.mxu0 0.0
    %100 = vmatprep.subr.mxu0 0.0
    %101 = vmatpush1.msra.mxu0 0.0
    %102 = vmatprep.subr.mxu0 0.0
    %103 = vmatpush1.msra.mxu0 0.0
    %104 = vmatprep.subr.mxu0 0.0
    %105 = vmatpush1.msra.mxu0 0.0
    %106 = vmatprep.subr.mxu0 0.0
    %107 = vmatpush1.msra.mxu0 0.0
    %108 = vmatprep.subr.mxu0 0.0
    %109 = vmatpush1.msra.mxu0 0.0
    %110 = vmatprep.subr.mxu0 0.0
    %111 = vmatpush1.msra.mxu0 0.0
    %112 = vmatprep.subr.mxu0 0.0
    %113 = vmatpush1.msra.mxu0 0.0
    %114 = vmatprep.subr.mxu0 0.0
    %115 = vmatpush1.msra.mxu0 0.0
    %116 = vmatprep.subr.mxu0 0.0
    %117 = vmatpush1.msra.mxu0 0.0
    %118 = vmatprep.subr.mxu0 0.0
    %119 = vmatpush1.msra.mxu0 0.0
    %120 = vmatprep.subr.mxu0 0.0
    %121 = vmatpush1.msra.mxu0 0.0
    %122 = vmatprep.subr.mxu0 0.0
    %123 = vmatpush1.msra.mxu0 0.0
    %124 = vmatprep.subr.mxu0 0.0
    %125 = vmatpush1.msra.mxu0 0.0
    %126 = vmatprep.subr.mxu0 0.0
    %127 = vmatpush1.msra.mxu0 0.0
    %128 = vmatprep.subr.mxu0 0.0
    %129 = vmatpush1.msra.mxu0 0.0
    %130 = vmatprep.subr.mxu0 0.0
    %131 = vmatpush1.msra.mxu0 0.0
    %132 = vmatprep.subr.mxu0 0.0
    %133 = vmatpush1.msra.mxu0 0.0
    %134 = vmatprep.subr.mxu0 0.0
    %135 = vmatpush1.msra.mxu0 0.0
    %136 = vmatprep.subr.mxu0 0.0
    %137 = vmatpush1.msra.mxu0 0.0
    %138 = vmatprep.subr.mxu0 0.0
    %139 = vmatpush1.msra.mxu0 0.0
    %140 = vmatprep.subr.mxu0 0.0
    %141 = vmatpush1.msra.mxu0 0.0
    %142 = vmatprep.mubr.f32.mxu0 0.0
    %143 = vmatmul.mubr.f32.gmra.mrb[0].mxu0 %v55
    %v144 = vpop.f32.mrb[0].mxu0
    %v145 = vadd.f32 %v36, %v144
    %v146 = vpop.f32.mrb[0].mxu0
    %v147 = vadd.f32 %v40, %v146
    %148 = vmatprep.mubr.f32.mxu0 0.0
    %149 = vmatmul.mubr.f32.gmra.mrb[0].mxu0 %v58
    %v150 = vpop.f32.mrb[0].mxu0
    %v151 = vadd.f32 %v36, %v150
    %v152 = vpop.f32.mrb[0].mxu0
    %v153 = vadd.f32 %v40, %v152
    %154 = vmatprep.mubr.f32.mxu0 0.0
    %155 = vmatmul.mubr.f32.gmra.mrb[0].mxu0 %v61
    %v156 = vpop.f32.mrb[0].mxu0
    %v157 = vadd.f32 %v36, %v156
    %v158 = vpop.f32.mrb[0].mxu0
    %v159 = vadd.f32 %v40, %v158
    %160 = vmatprep.mubr.f32.mxu0 0.0
    %161 = vmatmul.mubr.f32.gmra.mrb[0].mxu0 %v64
    %v162 = vpop.f32.mrb[0].mxu0
    %v163 = vadd.f32 %v36, %v162
    %v164 = vpop.f32.mrb[0].mxu0
    %v165 = vadd.f32 %v40, %v164
    %166 = vmatprep.mubr.f32.mxu0 0.0
    %167 = vmatmul.mubr.f32.gmra.mrb[0].mxu0 %v67
    %v168 = vpop.f32.mrb[0].mxu0
    %v169 = vadd.f32 %v36, %v168
    %v170 = vpop.f32.mrb[0].mxu0
    %v171 = vadd.f32 %v40, %v170
    %172 = vmatprep.mubr.f32.mxu0 0.0
    %173 = vmatmul.mubr.f32.gmra.mrb[0].mxu0 %v70
    %v174 = vpop.f32.mrb[0].mxu0
    %v175 = vadd.f32 %v36, %v174
    %v176 = vpop.f32.mrb[0].mxu0
    %v177 = vadd.f32 %v40, %v176
    %178 = vmatprep.mubr.f32.mxu0 0.0
    %179 = vmatmul.mubr.f32.gmra.mrb[0].mxu0 %v73
    %v180 = vpop.f32.mrb[0].mxu0
    %v181 = vadd.f32 %v36, %v180
    %v182 = vpop.f32.mrb[0].mxu0
    %v183 = vadd.f32 %v40, %v182
    %184 = vmatprep.mubr.f32.mxu0 0.0
    %185 = vmatmul.mubr.f32.gmra.mrb[0].mxu0 %v76
    %v186 = vpop.f32.mrb[0].mxu0
    %v187 = vadd.f32 %v36, %v186
    %v188 = vpop.f32.mrb[0].mxu0
    %v189 = vadd.f32 %v40, %v188
    %190 = vdwg.mxu0
    %191 = vmatprep.subr.mxu0 %v26
    %192 = vmatpush1.msra.mxu0 %v25
    %193 = vmatprep.subr.mxu0 %v30
    %194 = vmatpush1.msra.mxu0 %v29
    %195 = vmatprep.subr.mxu0 0.0
    %196 = vmatpush1.msra.mxu0 0.0
    %197 = vmatprep.subr.mxu0 0.0
    %198 = vmatpush1.msra.mxu0 0.0
    %199 = vmatprep.subr.mxu0 0.0
    %200 = vmatpush1.msra.mxu0 0.0
    %201 = vmatprep.subr.mxu0 0.0
    %202 = vmatpush1.msra.mxu0 0.0
    %203 = vmatprep.subr.mxu0 0.0
    %204 = vmatpush1.msra.mxu0 0.0
    %205 = vmatprep.subr.mxu0 0.0
    %206 = vmatpush1.msra.mxu0 0.0
    %207 = vmatprep.subr.mxu0 0.0
    %208 = vmatpush1.msra.mxu0 0.0
    %209 = vmatprep.subr.mxu0 0.0
    %210 = vmatpush1.msra.mxu0 0.0
    %211 = vmatprep.subr.mxu0 0.0
    %212 = vmatpush1.msra.mxu0 0.0
    %213 = vmatprep.subr.mxu0 0.0
    %214 = vmatpush1.msra.mxu0 0.0
    %215 = vmatprep.subr.mxu0 0.0
    %216 = vmatpush1.msra.mxu0 0.0
    %217 = vmatprep.subr.mxu0 0.0
    %218 = vmatpush1.msra.mxu0 0.0
    %219 = vmatprep.subr.mxu0 0.0
    %220 = vmatpush1.msra.mxu0 0.0
    %221 = vmatprep.subr.mxu0 0.0
    %222 = vmatpush1.msra.mxu0 0.0
    %223 = vmatprep.subr.mxu0 0.0
    %224 = vmatpush1.msra.mxu0 0.0
    %225 = vmatprep.subr.mxu0 0.0
    %226 = vmatpush1.msra.mxu0 0.0
    %227 = vmatprep.subr.mxu0 0.0
    %228 = vmatpush1.msra.mxu0 0.0
    %229 = vmatprep.subr.mxu0 0.0
    %230 = vmatpush1.msra.mxu0 0.0
    %231 = vmatprep.subr.mxu0 0.0
    %232 = vmatpush1.msra.mxu0 0.0
    %233 = vmatprep.subr.mxu0 0.0
    %234 = vmatpush1.msra.mxu0 0.0
    %235 = vmatprep.subr.mxu0 0.0
    %236 = vmatpush1.msra.mxu0 0.0
    %237 = vmatprep.subr.mxu0 0.0
    %238 = vmatpush1.msra.mxu0 0.0
    %239 = vmatprep.subr.mxu0 0.0
    %240 = vmatpush1.msra.mxu0 0.0
    %241 = vmatprep.subr.mxu0 0.0
    %242 = vmatpush1.msra.mxu0 0.0
    %243 = vmatprep.subr.mxu0 0.0
    %244 = vmatpush1.msra.mxu0 0.0
    %245 = vmatprep.subr.mxu0 0.0
    %246 = vmatpush1.msra.mxu0 0.0
    %247 = vmatprep.subr.mxu0 0.0
    %248 = vmatpush1.msra.mxu0 0.0
    %249 = vmatprep.subr.mxu0 0.0
    %250 = vmatpush1.msra.mxu0 0.0
    %251 = vmatprep.subr.mxu0 0.0
    %252 = vmatpush1.msra.mxu0 0.0
    %253 = vmatprep.subr.mxu0 0.0
    %254 = vmatpush1.msra.mxu0 0.0
    %255 = vmatprep.mubr.f32.mxu0 0.0
    %256 = vmatmul.mubr.f32.gmra.mrb[0].mxu0 %v55
    %v257 = vpop.f32.mrb[0].mxu0
    %v258 = vadd.f32 %v44, %v257
    %v259 = vpop.f32.mrb[0].mxu0
    %v260 = vadd.f32 %v48, %v259
    %261 = vmatprep.mubr.f32.mxu0 0.0
    %262 = vmatmul.mubr.f32.gmra.mrb[0].mxu0 %v58
    %v263 = vpop.f32.mrb[0].mxu0
    %v264 = vadd.f32 %v44, %v263
    %v265 = vpop.f32.mrb[0].mxu0
    %v266 = vadd.f32 %v48, %v265
    %267 = vmatprep.mubr.f32.mxu0 0.0
    %268 = vmatmul.mubr.f32.gmra.mrb[0].mxu0 %v61
    %v269 = vpop.f32.mrb[0].mxu0
    %v270 = vadd.f32 %v44, %v269
    %v271 = vpop.f32.mrb[0].mxu0
    %v272 = vadd.f32 %v48, %v271
    %273 = vmatprep.mubr.f32.mxu0 0.0
    %274 = vmatmul.mubr.f32.gmra.mrb[0].mxu0 %v64
    %v275 = vpop.f32.mrb[0].mxu0
    %v276 = vadd.f32 %v44, %v275
    %v277 = vpop.f32.mrb[0].mxu0
    %v278 = vadd.f32 %v48, %v277
    %279 = vmatprep.mubr.f32.mxu0 0.0
    %280 = vmatmul.mubr.f32.gmra.mrb[0].mxu0 %v67
    %v281 = vpop.f32.mrb[0].mxu0
    %v282 = vadd.f32 %v44, %v281
    %v283 = vpop.f32.mrb[0].mxu0
    %v284 = vadd.f32 %v48, %v283
    %285 = vmatprep.mubr.f32.mxu0 0.0
    %286 = vmatmul.mubr.f32.gmra.mrb[0].mxu0 %v70
    %v287 = vpop.f32.mrb[0].mxu0
    %v288 = vadd.f32 %v44, %v287
    %v289 = vpop.f32.mrb[0].mxu0
    %v290 = vadd.f32 %v48, %v289
    %291 = vmatprep.mubr.f32.mxu0 0.0
    %292 = vmatmul.mubr.f32.gmra.mrb[0].mxu0 %v73
    %v293 = vpop.f32.mrb[0].mxu0
    %v294 = vadd.f32 %v44, %v293
    %v295 = vpop.f32.mrb[0].mxu0
    %v296 = vadd.f32 %v48, %v295
    %297 = vmatprep.mubr.f32.mxu0 0.0
    %298 = vmatmul.mubr.f32.gmra.mrb[0].mxu0 %v76
    %v299 = vpop.f32.mrb[0].mxu0
    %v300 = vadd.f32 %v44, %v299
    %v301 = vpop.f32.mrb[0].mxu0
    %v302 = vadd.f32 %v48, %v301
    %303 = vdwg.mxu0
    %304 = vst [vmem:[#allocation2] sm:$0xff] %v145
    %305 = vst [vmem:[#allocation2 + $0x8] sm:$0xff] %v147
    %306 = vst [vmem:[#allocation2 + $0x10] sm:$0xff] %v258
    %307 = vst [vmem:[#allocation2 + $0x18] sm:$0xff] %v260
    %308 = vst [vmem:[#allocation2 + $0x20] sm:$0xff] %v151
    %309 = vst [vmem:[#allocation2 + $0x28] sm:$0xff] %v153
    %310 = vst [vmem:[#allocation2 + $0x30] sm:$0xff] %v264
    %311 = vst [vmem:[#allocation2 + $0x38] sm:$0xff] %v266
    %312 = vst [vmem:[#allocation2 + $0x40] sm:$0xff] %v157
    %313 = vst [vmem:[#allocation2 + $0x48] sm:$0xff] %v159
    %314 = vst [vmem:[#allocation2 + $0x50] sm:$0xff] %v270
    %315 = vst [vmem:[#allocation2 + $0x58] sm:$0xff] %v272
    %316 = vst [vmem:[#allocation2 + $0x60] sm:$0xff] %v163
    %317 = vst [vmem:[#allocation2 + $0x68] sm:$0xff] %v165
    %318 = vst [vmem:[#allocation2 + $0x70] sm:$0xff] %v276
    %319 = vst [vmem:[#allocation2 + $0x78] sm:$0xff] %v278
    %320 = vst [vmem:[#allocation2 + $0x80] sm:$0xff] %v169
    %321 = vst [vmem:[#allocation2 + $0x88] sm:$0xff] %v171
    %322 = vst [vmem:[#allocation2 + $0x90] sm:$0xff] %v282
    %323 = vst [vmem:[#allocation2 + $0x98] sm:$0xff] %v284
    %324 = vst [vmem:[#allocation2 + $0xa0] sm:$0xff] %v175
    %325 = vst [vmem:[#allocation2 + $0xa8] sm:$0xff] %v177
    %326 = vst [vmem:[#allocation2 + $0xb0] sm:$0xff] %v288
    %327 = vst [vmem:[#allocation2 + $0xb8] sm:$0xff] %v290
    %328 = vst [vmem:[#allocation2 + $0xc0] sm:$0xff] %v181
    %329 = vst [vmem:[#allocation2 + $0xc8] sm:$0xff] %v183
    %330 = vst [vmem:[#allocation2 + $0xd0] sm:$0xff] %v294
    %331 = vst [vmem:[#allocation2 + $0xd8] sm:$0xff] %v296
    %332 = vst [vmem:[#allocation2 + $0xe0] sm:$0xff] %v187
    %333 = vst [vmem:[#allocation2 + $0xe8] sm:$0xff] %v189
    %334 = vst [vmem:[#allocation2 + $0xf0] sm:$0xff] %v300
    %335 = vst [vmem:[#allocation2 + $0xf8] sm:$0xff] %v302
    // Predicated region
    $region14: #{tpu_custom_call.1} parent=1 // pred_check
      _
    $region15: #{tpu_custom_call.1} parent=1 // pred_check_branch
      %337 = sbr.rel (0) target = $region17
    $region16: #{tpu_custom_call.1} parent=1 // pred_region
      %s339 = ssub.s32 4096, 4096
      %340 = vsyncadd [#allocation3], %s339
      %s341 = sshll.u32 [#allocation2], 4
      %s342 = int_to_ptr.vmem [resolvable:$true] %s341
      %347 = dma.vmem_to_hbm [thread:$0]  %s342, 4096, %s3, [#allocation3], 512, 512, 32
    $region17: #{tpu_custom_call.1} parent=1 // pred_fallthru
      _
    // Predicated region
    $region18: #{tpu_custom_call.1} parent=1 // pred_check
      _
    $region19: #{tpu_custom_call.1} parent=1 // pred_check_branch
      %349 = sbr.rel (0) target = $region21
    $region20: #{tpu_custom_call.1} parent=1 // pred_region
      %350 = dma.done [#allocation3], 4096
    $region21: #{tpu_custom_call.1} parent=1 // pred_fallthru
      _
    %351 = vsyncpa [#allocation3], 1

</llo_original>
